<compile_context>
chip_gen: v7x
topology: tpu7x:2x2x1
jax: 0.10.0
libtpu: 0.0.40
codegen_flags: <defaults>
</compile_context>

<pallas_src>
import jax
import jax.numpy as jnp
from jax.experimental import pallas as pl
from jax.experimental.pallas import tpu as pltpu


_OUT_HW = 224                  # transforms.Resize((224, 224))
_TILE_BUDGET_BYTES = 4 << 20   # target bytes per image tile (Pallas double-buffers it)


def _round_up(x, m):
    return ((x + m - 1) // m) * m


# ----------------------------------------------------------------------------
# Fused kernel: weighted spatial reduction + scalar affine + sigmoid
#   grid = (batch_tiles,)  -- each step is fully independent ("parallel")
# ----------------------------------------------------------------------------
def _fused_kernel(b_ref, x_ref, w_ref, o_ref):
    # x_ref: (tb, H, W) f32 image tile
    # w_ref: (H, W) f32 resize-mean weights, pre-scaled by folded classifier scale `a`
    # b_ref: (1,) f32 folded classifier bias (SMEM)
    xw = x_ref[...] * w_ref[...][None, :, :]          # VPU multiply, f32
    s = jnp.sum(xw, axis=1)                           # (tb, W)  combine H planes (VPU adds)
    s = jnp.sum(s, axis=1, keepdims=True)             # (tb, 1)  single cross-lane reduce
    o_ref[...] = jax.nn.sigmoid(s + b_ref[0])


def _pick_batch_tile(B, H, W, budget=_TILE_BUDGET_BYTES):
    """Batch tile: big enough to amortize per-step overhead, small enough for VMEM,
    and >= 2 grid steps for large batches (v7x dual TensorCores)."""
    per_img = H * W * 4
    fit = max(1, budget // per_img)
    if fit >= B or B <= 8:
        if B >= 16:
            return min(B, _round_up(pl.cdiv(B, 2), 8))   # split work across both TCs
        return B                                          # whole batch in one block
    return max(8, (fit // 8) * 8)
    # TODO(synk): extremely large single images (tens of MiB each) would additionally need
    # spatial chunking; not required for this model's typical input sizes.


def fused_resize_pool_head(x_bhw_f32, w2d_f32, bias_f32, *, tb):
    """x_bhw_f32: [B, H, W] f32 source image (single channel),
    w2d_f32: [H, W] f32 resize-mean weights * folded scale,
    bias_f32: [1] f32 folded bias.  Returns sigmoid probabilities [Bp, 1] f32."""
    B, H, W = x_bhw_f32.shape
    nb = pl.cdiv(B, tb)
    Bp = nb * tb

    # 2x double-buffered image tile + 2x (resident) weight map + slack; clamp < v7x's 64 MiB.
    vmem_need = 2 * tb * H * W * 4 + 2 * H * W * 4 + (1 << 20)
    vmem_limit = int(min(max(vmem_need, 32 << 20), 56 << 20))

    return pl.pallas_call(
        _fused_kernel,
        out_shape=jax.ShapeDtypeStruct((Bp, 1), jnp.float32),
        grid_spec=pltpu.PrefetchScalarGridSpec(
            num_scalar_prefetch=0,
            grid=(nb,),
            in_specs=[
                pl.BlockSpec(memory_space=pltpu.MemorySpace.SMEM),      # folded bias scalar
                pl.BlockSpec((tb, H, W), lambda i: (i, 0, 0)),          # image tile (full H, W)
                pl.BlockSpec((H, W), lambda i: (0, 0)),                 # weights: grid-resident
            ],
            out_specs=pl.BlockSpec((tb, 1), lambda i: (i, 0)),
        ),
        compiler_params=pltpu.CompilerParams(
            dimension_semantics=("parallel",),
            vmem_limit_bytes=vmem_limit,
        ),
    )(bias_f32, x_bhw_f32, w2d_f32)


# ----------------------------------------------------------------------------
# Trace-time constant folding
# ----------------------------------------------------------------------------
def _resize_mean_weights(H, W):
    """wr[H], wc[W] such that mean(bilinear_resize(img,(224,224))) == wr @ img @ wc.
    Bilinear resize is linear and separable, so its 1-D operators are extracted by
    resizing identity matrices (trace-time only, tiny)."""
    row_mat = jax.image.resize(jnp.eye(H, dtype=jnp.float32), (_OUT_HW, H), method="bilinear")
    col_mat = jax.image.resize(jnp.eye(W, dtype=jnp.float32), (_OUT_HW, W), method="bilinear")
    wr = row_mat.sum(axis=0) / _OUT_HW
    wc = col_mat.sum(axis=0) / _OUT_HW
    return wr, wc


def make_params(key):
    k = jax.random.split(key, 6)
    return {
        # biformer_base stand-in projection: pooled RGB feature [3] -> 1000 logits
        "we": jax.random.normal(k[0], (3, 1000), jnp.float32) * 0.1,
        "be": jax.random.normal(k[1], (1, 1000), jnp.float32) * 0.01,
        # classifier: Linear(1000, 100)
        "w1": jax.random.normal(k[2], (1000, 100), jnp.float32) * (1.0 / jnp.sqrt(1000.0)),
        "b1": jax.random.normal(k[3], (1, 100), jnp.float32) * 0.01,
        # classifier: Linear(100, 1)
        "w2": jax.random.normal(k[4], (100, 1), jnp.float32) * (1.0 / jnp.sqrt(100.0)),
        "b2": jax.random.normal(k[5], (1, 1), jnp.float32) * 0.01,
    }


def fold_params(params):
    """Collapse proj[3->1000] -> Linear(1000,100) -> Dropout(eval) -> Linear(100,1)
    into a single scalar affine (channels are identical replicas, so the [3,1]
    effective weight collapses further to its sum)."""
    w_eff = params["we"] @ params["w1"] @ params["w2"]                       # [3, 1]
    b_eff = (params["be"] @ params["w1"] @ params["w2"]
             + params["b1"] @ params["w2"] + params["b2"])                   # [1, 1]
    a = jnp.sum(w_eff)          # feat[b,:] = pooled[b] * ones(3)
    b = b_eff[0, 0]
    return a, b


# ----------------------------------------------------------------------------
# Full forward pass
# ----------------------------------------------------------------------------
def model_forward(x_nchw, params):
    # TODO(synk): ICC() preprocessing net is external/undefined in the source; treated as identity.
    # TODO(synk): biformer_base backbone is external/undefined; replaced with a synthetic stand-in
    #             (global average pool of the resized image + Linear(3 -> 1000)).
    # NOTE: jax bilinear resize has no antialias, unlike torchvision's PIL path when downsampling.
    B, C, H, W = x_nchw.shape

    wr, wc = _resize_mean_weights(H, W)
    a, b = fold_params(params)
    w2d = (jnp.outer(wr, wc) * a).astype(jnp.float32)        # scale folded into the weights
    bias = jnp.reshape(b, (1,)).astype(jnp.float32)

    # single source channel (repeat(1,3,1,1) replicas are identical); squeeze is a free reshape.
    x_bhw = x_nchw[:, 0]                                     # [B, H, W] f32, no copy of data

    tb = _pick_batch_tile(B, H, W)
    out_pad = fused_resize_pool_head(x_bhw, w2d, bias, tb=tb)   # [Bp, 1]
    return out_pad[:B]                                          # [B, 1]


def _reference_forward(x_nchw, params):
    """Pure-JAX eval-mode reference of the stand-in model (for correctness check)."""
    B = x_nchw.shape[0]
    x3 = jnp.repeat(x_nchw, 3, axis=1)
    xr = jax.image.resize(x3, (B, 3, _OUT_HW, _OUT_HW), method="bilinear")
    pooled = xr.mean(axis=(2, 3))                            # [B, 3] GAP backbone stand-in input
    feat = pooled @ params["we"] + params["be"]              # [B, 1000]
    h = feat @ params["w1"] + params["b1"]                   # Dropout(0.5) is identity in eval
    logit = h @ params["w2"] + params["b2"]
    return jax.nn.sigmoid(logit)


if __name__ == "__main__":
    key = jax.random.PRNGKey(0)
    k_params, k_x = jax.random.split(key)

    params = make_params(k_params)
    # small input consistent with the forward: B=2, 1 channel, 16x16 spatial
    x = jax.random.normal(k_x, (2, 1, 16, 16), dtype=jnp.float32)

    out = jax.block_until_ready(model_forward(x, params))

    assert out.shape == (2, 1)
    assert bool(jnp.all((out >= 0.0) & (out <= 1.0)))

    ref = _reference_forward(x, params)
    assert bool(jnp.allclose(out, ref, atol=1e-3)), (out, ref)

    print("KERNEL_OK")
</pallas_src>

<mosaic_0001>
module attributes {stable_mosaic.version = 11 : i64} {
  func.func @_fused_kernel(%arg0: i32, %arg1: memref<1xf32, #tpu.memory_space<smem>>, %arg2: memref<2x16x16xf32, #tpu.memory_space<vmem>>, %arg3: memref<16x16xf32, #tpu.memory_space<vmem>>, %arg4: memref<2x1xf32, #tpu.memory_space<vmem>>) attributes {dimension_semantics = [#tpu.dimension_semantics<parallel>], iteration_bounds = array<i64: 1>, scalar_prefetch = 0 : i64, scratch_operands = 0 : i64, tpu.core_type = #tpu.core_type<tc>, window_params = [{transform_indices = @transform_0, window_bounds = array<i64: 1>}, {transform_indices = @transform_1, window_bounds = array<i64: 2, 16, 16>}, {pipeline_mode = #tpu.pipeline_mode<synchronous>, transform_indices = @transform_2, window_bounds = array<i64: 16, 16>}, {transform_indices = @transform_3, window_bounds = array<i64: 2, 1>}]} {
    %c0 = arith.constant 0 : index
    %c0_0 = arith.constant 0 : index
    %c0_1 = arith.constant 0 : index
    %0 = vector.load %arg2[%c0, %c0_0, %c0_1] : memref<2x16x16xf32, #tpu.memory_space<vmem>>, vector<2x16x16xf32>
    %c0_2 = arith.constant 0 : index
    %c0_3 = arith.constant 0 : index
    %1 = vector.load %arg3[%c0_2, %c0_3] : memref<16x16xf32, #tpu.memory_space<vmem>>, vector<16x16xf32>
    %2 = vector.shape_cast %1 : vector<16x16xf32> to vector<1x16x16xf32>
    %3 = vector.broadcast %2 : vector<1x16x16xf32> to vector<2x16x16xf32>
    %4 = arith.mulf %0, %3 : vector<2x16x16xf32>
    %cst = arith.constant dense<0.000000e+00> : vector<2x16xf32>
    %5 = vector.multi_reduction <add>, %4, %cst [1] : vector<2x16x16xf32> to vector<2x16xf32>
    %cst_4 = arith.constant dense<0.000000e+00> : vector<2xf32>
    %6 = vector.multi_reduction <add>, %5, %cst_4 [1] : vector<2x16xf32> to vector<2xf32>
    %7 = vector.shape_cast %6 : vector<2xf32> to vector<2x1xf32>
    %c0_5 = arith.constant 0 : index
    %8 = memref.load %arg1[%c0_5] : memref<1xf32, #tpu.memory_space<smem>>
    %9 = vector.broadcast %8 : f32 to vector<2x1xf32>
    %10 = arith.addf %7, %9 : vector<2x1xf32>
    %11 = arith.negf %10 : vector<2x1xf32>
    %12 = math.exp %11 : vector<2x1xf32>
    %cst_6 = arith.constant 1.000000e+00 : f32
    %13 = vector.broadcast %cst_6 : f32 to vector<2x1xf32>
    %14 = arith.addf %13, %12 : vector<2x1xf32>
    %15 = arith.divf %13, %14 : vector<2x1xf32>
    %c0_7 = arith.constant 0 : index
    %c0_8 = arith.constant 0 : index
    %16 = vector.load %arg4[%c0_7, %c0_8] : memref<2x1xf32, #tpu.memory_space<vmem>>, vector<2x1xf32>
    tpu.vector_store %arg4[%c0_7, %c0_8], %15 {strides = array<i32>} : memref<2x1xf32, #tpu.memory_space<vmem>>, vector<2x1xf32>,
    return
  }
  func.func @transform_0(%arg0: i32) -> i32 {
    %c0_i32 = arith.constant 0 : i32
    %c0_i32_0 = arith.constant 0 : i32
    return %c0_i32 : i32
  }
  func.func @transform_1(%arg0: i32) -> (i32, i32, i32) {
    %c0_i32 = arith.constant 0 : i32
    %c0_i32_0 = arith.constant 0 : i32
    %c0_i32_1 = arith.constant 0 : i32
    return %arg0, %c0_i32, %c0_i32_0 : i32, i32, i32
  }
  func.func @transform_2(%arg0: i32) -> (i32, i32) {
    %c0_i32 = arith.constant 0 : i32
    %c0_i32_0 = arith.constant 0 : i32
    %c0_i32_1 = arith.constant 0 : i32
    return %c0_i32, %c0_i32_0 : i32, i32
  }
  func.func @transform_3(%arg0: i32) -> (i32, i32) {
    %c0_i32 = arith.constant 0 : i32
    %c0_i32_0 = arith.constant 0 : i32
    return %arg0, %c0_i32 : i32, i32
  }
}

</mosaic_0001>

<llo_original>
// kernel: tpu_custom_call.1
$region0: #{tpu_custom_call.1}
  #allocation0 [shape = 'u32[]', space=smem, size = 0x4, offset = 0x4, fixed_abs, tag = 'smem constant byte address 0x4 - core index']
  #allocation1 [shape = 'u32[144,128]{1,0:T(1,128)}', space=vmem, size = 0x12000, scoped, tag = 'internal scratch']
  #allocation2 [shape = 'f32[1]{0:T(128)S(6)}', space=smem, size = 0x200, scoped, tag = 'scoped memory for tpu_custom_call.1']
  %s0 = inlined_call_operand.<no memory space> [shape: f32[1], index: 0, kind: input, shape index: {}]
  %s1 = inlined_call_operand.hbm [shape: f32[2,16,16], index: 1, kind: input, shape index: {}]
  %s2 = inlined_call_operand.hbm [shape: f32[16,16], index: 2, kind: input, shape index: {}]
  %s3 = inlined_call_operand.vmem [shape: f32[2,1], index: 3, kind: output, shape index: {}]
  %s4 = sld [smem:[#allocation0]]
  $region30: #{tpu_custom_call.1} parent=0
    _
  %s6 = ssub.s32 1, %s4
  %s7 = scalar_select 0, %s6, %s4
  %8 = sst [smem:[#allocation2]] %s0
  $region1: #{tpu_custom_call.1} parent=0
    #allocation3 [shape = 'u8[16384]{0}', space=vmem, size = 0x4000, scoped, tag = 'input window, operand 1, single buffered']
    #allocation4 [shape = 's32[1]{0}', space=sflag, size = 0x4, scoped, tag = 'scoped memory for tpu_custom_call.1']
    #allocation5 [shape = 'u8[8192]{0}', space=vmem, size = 0x2000, scoped, tag = 'input window, operand 2, single buffered']
    #allocation6 [shape = 's32[1]{0}', space=sflag, size = 0x4, scoped, tag = 'scoped memory for tpu_custom_call.1']
    %9 = vsyncpa [#allocation4], 0
    %10 = vsyncpa [#allocation6], 0
    // Predicated region
    $region2: #{tpu_custom_call.1} parent=1 // pred_check
      _
    $region3: #{tpu_custom_call.1} parent=1 // pred_check_branch
      %12 = sbr.rel (0) target = $region5
    $region4: #{tpu_custom_call.1} parent=1 // pred_region
      _
    $region5: #{tpu_custom_call.1} parent=1 // pred_fallthru
      _
    // Predicated region
    $region6: #{tpu_custom_call.1} parent=1 // pred_check
      _
    $region7: #{tpu_custom_call.1} parent=1 // pred_check_branch
      %14 = sbr.rel (0) target = $region9
    $region8: #{tpu_custom_call.1} parent=1 // pred_region
      %s16 = ssub.s32 512, 512
      %17 = vsyncadd [#allocation4], %s16
      %s18 = sshll.u32 [#allocation3], 4
      %s19 = int_to_ptr.vmem [resolvable:$true] %s18
      %24 = dma.hbm_to_vmem [thread:$0]  %s1, 512, %s19, [#allocation4], 128, 128, 8
    $region9: #{tpu_custom_call.1} parent=1 // pred_fallthru
      _
    // Predicated region
    $region10: #{tpu_custom_call.1} parent=1 // pred_check
      _
    $region11: #{tpu_custom_call.1} parent=1 // pred_check_branch
      %26 = sbr.rel (0) target = $region13
    $region12: #{tpu_custom_call.1} parent=1 // pred_region
      %s28 = ssub.s32 256, 256
      %29 = vsyncadd [#allocation6], %s28
      %s30 = sshll.u32 [#allocation5], 4
      %s31 = int_to_ptr.vmem [resolvable:$true] %s30
      %36 = dma.hbm_to_vmem [thread:$0]  %s2, 256, %s31, [#allocation6], 128, 128, 8
    $region13: #{tpu_custom_call.1} parent=1 // pred_fallthru
      _
    // Predicated region
    $region14: #{tpu_custom_call.1} parent=1 // pred_check
      _
    $region15: #{tpu_custom_call.1} parent=1 // pred_check_branch
      %38 = sbr.rel (0) target = $region17
    $region16: #{tpu_custom_call.1} parent=1 // pred_region
      %39 = dma.done [#allocation4], 512
    $region17: #{tpu_custom_call.1} parent=1 // pred_fallthru
      _
    // Predicated region
    $region18: #{tpu_custom_call.1} parent=1 // pred_check
      _
    $region19: #{tpu_custom_call.1} parent=1 // pred_check_branch
      %41 = sbr.rel (0) target = $region21
    $region20: #{tpu_custom_call.1} parent=1 // pred_region
      %42 = dma.done [#allocation6], 256
    $region21: #{tpu_custom_call.1} parent=1 // pred_fallthru
      _
    %v43 = vld [vmem:[#allocation3] sm:$0xff]
    %v44 = vld [vmem:[#allocation3 + $0x8] sm:$0xff]
    %v45 = vld [vmem:[#allocation3 + $0x10] sm:$0xff]
    %v46 = vld [vmem:[#allocation3 + $0x18] sm:$0xff]
    %v47 = vld [vmem:[#allocation5] sm:$0xff]
    %v48 = vld [vmem:[#allocation5 + $0x8] sm:$0xff]
    %v49 = vmul.f32 %v43, %v47
    %v50 = vmul.f32 %v44, %v48
    %v51 = vmul.f32 %v45, %v47
    %v52 = vmul.f32 %v46, %v48
    %vm53 = vcmask 130048
    %v54 = vsel %vm53, %v49, 0.0
    %v55 = vsel %vm53, %v50, 0.0
    %v56 = vadd.f32 %v54, %v55
    %v57 = vrot.slane %v56, 4
    %v58 = vadd.f32 %v56, %v57
    %v59 = vrot.slane %v58, 2
    %v60 = vadd.f32 %v58, %v59
    %v61 = vrot.slane %v60, 1
    %v62 = vadd.f32 %v60, %v61
    %v63 = vsel %vm53, %v51, 0.0
    %v64 = vsel %vm53, %v52, 0.0
    %v65 = vadd.f32 %v63, %v64
    %v66 = vrot.slane %v65, 4
    %v67 = vadd.f32 %v65, %v66
    %v68 = vrot.slane %v67, 2
    %v69 = vadd.f32 %v67, %v68
    %v70 = vrot.slane %v69, 1
    %v71 = vadd.f32 %v69, %v70
    %vm74 = vcmask 1041409
    %v75 = vsel %vm74, %v71, %v62
    %vm77 = vcmask 123904
    %v78 = vsel %vm77, %v75, 0.0
    %79 = vadd.xlane.f32.xlu0 %v78
    %v80 = vpop.xlane.xlu0 %79
    %s81 = sld [smem:[#allocation2]]
    %v82 = vstv %s81
    %v83 = vadd.f32 %v80, %v82
    %v84 = vxor.u32 %v83, 2147483648
    %v85 = vmul.f32 %v84, 1.442695
    %v86 = vpow.pop %v85
    %v87 = vadd.f32 %v86, 1.0
    %v88 = vrcp.pop %v87
    %v89 = vmul.f32 1.0, %v88
    %vm90 = vcmask 1024
    %91 = vst.msk [vmem:[%s3] sm:$0x3] %vm90, %v89
    // Predicated region
    $region22: #{tpu_custom_call.1} parent=1 // pred_check
      _
    $region23: #{tpu_custom_call.1} parent=1 // pred_check_branch
      %93 = sbr.rel (0) target = $region25
    $region24: #{tpu_custom_call.1} parent=1 // pred_region
      _
    $region25: #{tpu_custom_call.1} parent=1 // pred_fallthru
      _
    // Predicated region
    $region26: #{tpu_custom_call.1} parent=1 // pred_check
      _
    $region27: #{tpu_custom_call.1} parent=1 // pred_check_branch
      %95 = sbr.rel (0) target = $region29
    $region28: #{tpu_custom_call.1} parent=1 // pred_region
      _
    $region29: #{tpu_custom_call.1} parent=1 // pred_fallthru
      _
    %96 = vsyncpa [#allocation4], 1
    %97 = vsyncpa [#allocation6], 1

</llo_original>
